<compile_context>
chip_gen: v5e
topology: v5e:2x2
jax: 0.10.0
libtpu: 0.0.40
codegen_flags: <defaults>
</compile_context>

<pallas_src>
import math
import functools

import jax
import jax.numpy as jnp
from jax import lax
from jax.experimental import pallas as pl
from jax.experimental.pallas import tpu as pltpu


def build_positional_encoding(d_model: int, max_len: int = 5000) -> jnp.ndarray:
    """Deterministic buffer init, identical to the PyTorch __init__."""
    position = jnp.arange(max_len, dtype=jnp.float32)[:, None]            # (max_len, 1)
    div_term = jnp.exp(
        jnp.arange(0, d_model, 2, dtype=jnp.float32) * (-math.log(10000.0) / d_model)
    )                                                                      # (d_model//2,)
    ang = position * div_term                                              # (max_len, d_model//2)
    pe = jnp.zeros((max_len, 1, d_model), dtype=jnp.float32)
    pe = pe.at[:, 0, 0::2].set(jnp.sin(ang))
    pe = pe.at[:, 0, 1::2].set(jnp.cos(ang))
    return pe


def _hash_u32(x):
    """lowbias32 integer hash — pure VPU int ops, lowers on TPU and in interpret mode."""
    x = x ^ (x >> jnp.uint32(16))
    x = x * jnp.uint32(0x7FEB352D)
    x = x ^ (x >> jnp.uint32(15))
    x = x * jnp.uint32(0x846CA68B)
    x = x ^ (x >> jnp.uint32(16))
    return x


def _pos_enc_kernel(seed_ref, x_ref, pe_ref, o_ref, *,
                    dropout_p: float, training: bool, batch: int, tile_rows: int):
    # x_ref:  (tile_rows, B*D) lane-dense slab in VMEM
    # pe_ref: (tile_rows, D)   in VMEM
    # seed_ref: (1,) int32     in SMEM
    x = x_ref[...]
    pe = pe_ref[...]

    # y[s, b*D + d] = x[s, b*D + d] + pe[s, d]  -> widen pe along lanes.
    if batch > 1:
        pe_row = jnp.concatenate([pe] * batch, axis=1)        # (tile_rows, B*D)
    else:
        pe_row = pe
    y = x.astype(jnp.float32) + pe_row

    if training and dropout_p > 0.0:
        # Inverted dropout (matches nn.Dropout(p) training semantics).
        # Counter-based hash keyed on (seed, global element index) so the mask
        # is identical regardless of tiling and differs per grid tile.
        # TODO(synk): not bit-identical to torch's RNG stream; int32 linear
        #             index limits exact indexing to tensors < 2^31 elements.
        ncols = x.shape[1]
        pid = pl.program_id(0)
        rows = lax.broadcasted_iota(jnp.int32, x.shape, 0) + pid * tile_rows
        cols = lax.broadcasted_iota(jnp.int32, x.shape, 1)
        lin = (rows * ncols + cols).astype(jnp.uint32)
        h = _hash_u32(lin + seed_ref[0].astype(jnp.uint32) * jnp.uint32(0x9E3779B9))
        r = (h >> jnp.uint32(8)).astype(jnp.int32)            # uniform in [0, 2^24)
        keep = r < jnp.int32(int(round((1.0 - dropout_p) * (1 << 24))))
        y = jnp.where(keep, y * jnp.float32(1.0 / (1.0 - dropout_p)), 0.0)

    o_ref[...] = y.astype(o_ref.dtype)


def positional_encoding_forward(x, pe, *, seed: int = 0, dropout_p: float = 0.1,
                                training: bool = False, tile_rows: int | None = None):
    """x: (S, B, D), pe: (max_len, 1, D) -> (S, B, D)."""
    S, B, D = x.shape
    BD = B * D
    x2d = x.reshape(S, BD)                # free view; keeps HBM traffic = x + out
    pe_slice = pe[:S, 0, :]               # (S, D)

    itemsize = jnp.dtype(x.dtype).itemsize
    if tile_rows is None:
        target_bytes = 2 << 20            # ~2 MiB per x tile: double-buffered in+out
        if S * BD * itemsize <= target_bytes:      # fits every generation's VMEM budget
            tile_rows = S
        else:
            tile_rows = max(8, min(S, (target_bytes // (BD * itemsize)) // 8 * 8))
    grid = (pl.cdiv(S, tile_rows),)

    kernel = functools.partial(
        _pos_enc_kernel,
        dropout_p=float(dropout_p), training=bool(training),
        batch=B, tile_rows=int(tile_rows),
    )

    out2d = pl.pallas_call(
        kernel,
        out_shape=jax.ShapeDtypeStruct((S, BD), x.dtype),
        grid=grid,
        in_specs=[
            pl.BlockSpec(memory_space=pltpu.MemorySpace.SMEM),      # seed scalar
            pl.BlockSpec((tile_rows, BD), lambda i: (i, 0)),        # x tile (lane-dense)
            pl.BlockSpec((tile_rows, D), lambda i: (i, 0)),         # pe tile (small)
        ],
        out_specs=pl.BlockSpec((tile_rows, BD), lambda i: (i, 0)),
        compiler_params=pltpu.CompilerParams(dimension_semantics=("parallel",)),
    )(jnp.asarray([seed], dtype=jnp.int32), x2d, pe_slice)

    return out2d.reshape(S, B, D)


if __name__ == "__main__":
    S, B, D = 16, 2, 32          # seq_len, batch, d_model (small, multi-tile with tile_rows=8)
    MAX_LEN = 64
    DROPOUT_P = 0.1

    key = jax.random.PRNGKey(0)
    x = jax.random.normal(key, (S, B, D), dtype=jnp.float32)
    pe = build_positional_encoding(D, MAX_LEN)
    ref = x + pe[:S]             # broadcast (S,1,D) over batch, same as torch

    # Eval-mode forward (dropout = identity); tile_rows=8 forces a 2-step grid.
    out_eval = positional_encoding_forward(x, pe, seed=0, dropout_p=DROPOUT_P,
                                           training=False, tile_rows=8)
    out_eval = jax.block_until_ready(out_eval)
    assert out_eval.shape == (S, B, D)
    assert jnp.allclose(out_eval, ref, atol=1e-6), "eval-mode mismatch vs reference"

    # Training-mode forward (in-kernel inverted dropout): every kept element
    # must equal ref / (1 - p); dropped elements are exactly 0.
    out_train = positional_encoding_forward(x, pe, seed=123, dropout_p=DROPOUT_P,
                                            training=True, tile_rows=8)
    out_train = jax.block_until_ready(out_train)
    assert out_train.shape == (S, B, D)
    kept = out_train != 0.0
    scale_ok = jnp.where(kept,
                         jnp.isclose(out_train, ref / (1.0 - DROPOUT_P), atol=1e-5),
                         True)
    assert bool(jnp.all(scale_ok)), "training-mode dropout scaling mismatch"

    print("KERNEL_OK")
</pallas_src>

<mosaic_0001>
module attributes {stable_mosaic.version = 11 : i64} {
  func.func @_pos_enc_kernel(%arg0: i32, %arg1: memref<1xi32, #tpu.memory_space<smem>>, %arg2: memref<8x64xf32, #tpu.memory_space<vmem>>, %arg3: memref<8x32xf32, #tpu.memory_space<vmem>>, %arg4: memref<8x64xf32, #tpu.memory_space<vmem>>) attributes {dimension_semantics = [#tpu.dimension_semantics<parallel>], iteration_bounds = array<i64: 2>, scalar_prefetch = 0 : i64, scratch_operands = 0 : i64, tpu.core_type = #tpu.core_type<tc>, window_params = [{transform_indices = @transform_0, window_bounds = array<i64: 1>}, {transform_indices = @transform_1, window_bounds = array<i64: 8, 64>}, {transform_indices = @transform_2, window_bounds = array<i64: 8, 32>}, {transform_indices = @transform_3, window_bounds = array<i64: 8, 64>}]} {
    %c0 = arith.constant 0 : index
    %c0_0 = arith.constant 0 : index
    %0 = vector.load %arg2[%c0, %c0_0] : memref<8x64xf32, #tpu.memory_space<vmem>>, vector<8x64xf32>
    %c0_1 = arith.constant 0 : index
    %c0_2 = arith.constant 0 : index
    %1 = vector.load %arg3[%c0_1, %c0_2] : memref<8x32xf32, #tpu.memory_space<vmem>>, vector<8x32xf32>
    %2 = tpu.concatenate %1, %1 in 1 : vector<8x32xf32>, vector<8x32xf32> -> vector<8x64xf32>
    %3 = arith.addf %0, %2 : vector<8x64xf32>
    %c0_3 = arith.constant 0 : index
    %c0_4 = arith.constant 0 : index
    %4 = vector.load %arg4[%c0_3, %c0_4] : memref<8x64xf32, #tpu.memory_space<vmem>>, vector<8x64xf32>
    tpu.vector_store %arg4[%c0_3, %c0_4], %3 {strides = array<i32>} : memref<8x64xf32, #tpu.memory_space<vmem>>, vector<8x64xf32>,
    return
  }
  func.func @transform_0(%arg0: i32) -> i32 {
    %c0_i32 = arith.constant 0 : i32
    %c0_i32_0 = arith.constant 0 : i32
    return %c0_i32 : i32
  }
  func.func @transform_1(%arg0: i32) -> (i32, i32) {
    %c0_i32 = arith.constant 0 : i32
    %c0_i32_0 = arith.constant 0 : i32
    return %arg0, %c0_i32 : i32, i32
  }
  func.func @transform_2(%arg0: i32) -> (i32, i32) {
    %c0_i32 = arith.constant 0 : i32
    %c0_i32_0 = arith.constant 0 : i32
    return %arg0, %c0_i32 : i32, i32
  }
  func.func @transform_3(%arg0: i32) -> (i32, i32) {
    %c0_i32 = arith.constant 0 : i32
    %c0_i32_0 = arith.constant 0 : i32
    return %arg0, %c0_i32 : i32, i32
  }
}

</mosaic_0001>

<llo_original>
// kernel: tpu_custom_call.1
$region0: #{tpu_custom_call.1}
  #allocation0 [shape = 'u32[]', space=smem, size = 0x4, offset = 0x4, fixed_abs, tag = 'smem constant byte address 0x4 - core index']
  #allocation1 [shape = 'u32[72,128]{1,0:T(1,128)}', space=vmem, size = 0x9000, scoped, tag = 'internal scratch']
  #allocation2 [shape = 's32[1]{0:T(128)S(6)}', space=smem, size = 0x200, scoped, tag = 'scoped memory for tpu_custom_call.1']
  %s0 = inlined_call_operand.<no memory space> [shape: s32[1], index: 0, kind: input, shape index: {}]
  %s1 = inlined_call_operand.hbm [shape: f32[16,64], index: 1, kind: input, shape index: {}]
  %s2 = inlined_call_operand.hbm [shape: f32[16,32], index: 2, kind: input, shape index: {}]
  %s3 = inlined_call_operand.hbm [shape: f32[16,64], index: 3, kind: output, shape index: {}]
  %s4 = sld [smem:[#allocation0]]
  $region53: #{tpu_custom_call.1} parent=0
    _
  %s6 = ssub.s32 1, %s4
  %s7 = scalar_select 0, %s6, %s4
  %8 = sst [smem:[#allocation2]] %s0
  $region1: #{tpu_custom_call.1} parent=0
    #allocation3 [shape = 'u8[8192]{0}', space=vmem, size = 0x2000, scoped, tag = 'input window, operand 1']
    #allocation4 [shape = 's32[2]{0}', space=sflag, size = 0x8, scoped, tag = 'scoped memory for tpu_custom_call.1']
    #allocation5 [shape = 's32[2]{0}', space=sflag, size = 0x8, scoped, tag = 'scoped memory for tpu_custom_call.1']
    #allocation6 [shape = 'u8[8192]{0}', space=vmem, size = 0x2000, scoped, tag = 'input window, operand 2']
    #allocation7 [shape = 's32[2]{0}', space=sflag, size = 0x8, scoped, tag = 'scoped memory for tpu_custom_call.1']
    #allocation8 [shape = 'u8[8192]{0}', space=vmem, size = 0x2000, scoped, tag = 'output window, operand 0']
    %9 = vsyncpa [#allocation4], 0
    %s10 = scalar_lea.sflag [#allocation4], 1
    %11 = vsyncpa %s10, 0
    %12 = vsyncpa [#allocation7], 0
    %s13 = scalar_lea.sflag [#allocation7], 1
    %14 = vsyncpa %s13, 0
    %15 = vsyncpa [#allocation5], 0
    %s16 = scalar_lea.sflag [#allocation5], 1
    %17 = vsyncpa %s16, 0
    loop: start=0, step=1, limit=4
    $region2: #{tpu_custom_call.1} parent=1 // loop_pre_header
      _
    $region3: #{tpu_custom_call.1} parent=1 // loop_header
      %s19 = sphi 0, %s23
      %p20 = scmp.ge.s32.totalorder %s19, 4
      %s27 = sphi 0, %s27
      %s29 = sphi 0, %s27
      %s30 = sphi 0, %s29
      %s44 = sphi 0, %s30
      %s50 = sphi 0, %s52
      %s53 = sphi 0, %s50
      %s54 = sphi 0, %s53
      %s70 = sphi 0, %s54
      %s76 = sphi 0, %s78
      %s79 = sphi 0, %s76
      %s80 = sphi 0, %s79
      %s96 = sphi 0, %s80
      %s102 = sphi 0, %s104
      %s105 = sphi 0, %s102
      %s106 = sphi 0, %s105
      %s122 = sphi 0, %s106
    $region4: #{tpu_custom_call.1} parent=1 // loop_header_branch
      %22 = sbr.rel (%p20) target = $region8
    $region5: #{tpu_custom_call.1} parent=1 // loop_body
      %s24 = ssub.s32 %s19, 1
      %s25 = ssub.s32 %s19, 2
      %s26 = sadd.s32 %s19, 1
      %s28 = sadd.s32 %s27, 1
      %p31 = scmp.eq.s32.totalorder %s19, 1
      %p32 = scmp.ne.s32.totalorder %s27, %s29
      %p33 = scmp.eq.s32.totalorder %s19, 0
      %p34 = por %p32, %p33
      %p35 = scmp.ne.s32.totalorder %s27, %s29
      %p36 = scmp.eq.s32.totalorder %s24, 1
      %p37 = por %p35, %p36
      %p38 = scmp.ne.s32.totalorder %s29, %s30
      %p39 = scmp.eq.s32.totalorder %s24, 0
      %p40 = por %p38, %p39
      %p41 = scmp.ne.s32.totalorder %s29, %s30
      %p42 = scmp.eq.s32.totalorder %s25, 1
      %p43 = por %p41, %p42
      %p45 = scmp.ne.s32.totalorder %s30, %s44
      %p46 = scmp.eq.s32.totalorder %s25, 0
      %p47 = por %p45, %p46
      %s48 = ssub.s32 %s19, %s26
      %p49 = scmp.eq.s32.totalorder %s48, 0
      %s51 = sadd.s32 %s50, 1
      %s52 = scalar_select %p49, %s50, %s51
      %p55 = pneg %p49
      %p56 = scmp.eq.s32.totalorder %s19, 1
      %p57 = por %p55, %p56
      %p58 = scmp.ne.s32.totalorder %s50, %s53
      %p59 = scmp.eq.s32.totalorder %s19, 0
      %p60 = por %p58, %p59
      %p61 = scmp.ne.s32.totalorder %s50, %s53
      %p62 = scmp.eq.s32.totalorder %s24, 1
      %p63 = por %p61, %p62
      %p64 = scmp.ne.s32.totalorder %s53, %s54
      %p65 = scmp.eq.s32.totalorder %s24, 0
      %p66 = por %p64, %p65
      %p67 = scmp.ne.s32.totalorder %s53, %s54
      %p68 = scmp.eq.s32.totalorder %s25, 1
      %p69 = por %p67, %p68
      %p71 = scmp.ne.s32.totalorder %s54, %s70
      %p72 = scmp.eq.s32.totalorder %s25, 0
      %p73 = por %p71, %p72
      %s74 = ssub.s32 %s19, %s26
      %p75 = scmp.eq.s32.totalorder %s74, 0
      %s77 = sadd.s32 %s76, 1
      %s78 = scalar_select %p75, %s76, %s77
      %p81 = pneg %p75
      %p82 = scmp.eq.s32.totalorder %s19, 1
      %p83 = por %p81, %p82
      %p84 = scmp.ne.s32.totalorder %s76, %s79
      %p85 = scmp.eq.s32.totalorder %s19, 0
      %p86 = por %p84, %p85
      %p87 = scmp.ne.s32.totalorder %s76, %s79
      %p88 = scmp.eq.s32.totalorder %s24, 1
      %p89 = por %p87, %p88
      %p90 = scmp.ne.s32.totalorder %s79, %s80
      %p91 = scmp.eq.s32.totalorder %s24, 0
      %p92 = por %p90, %p91
      %p93 = scmp.ne.s32.totalorder %s79, %s80
      %p94 = scmp.eq.s32.totalorder %s25, 1
      %p95 = por %p93, %p94
      %p97 = scmp.ne.s32.totalorder %s80, %s96
      %p98 = scmp.eq.s32.totalorder %s25, 0
      %p99 = por %p97, %p98
      %s100 = ssub.s32 %s19, %s26
      %p101 = scmp.eq.s32.totalorder %s100, 0
      %s103 = sadd.s32 %s102, 1
      %s104 = scalar_select %p101, %s102, %s103
      %p107 = pneg %p101
      %p108 = scmp.eq.s32.totalorder %s19, 1
      %p109 = por %p107, %p108
      %p110 = scmp.ne.s32.totalorder %s102, %s105
      %p111 = scmp.eq.s32.totalorder %s19, 0
      %p112 = por %p110, %p111
      %p113 = scmp.ne.s32.totalorder %s102, %s105
      %p114 = scmp.eq.s32.totalorder %s24, 1
      %p115 = por %p113, %p114
      %p116 = scmp.ne.s32.totalorder %s105, %s106
      %p117 = scmp.eq.s32.totalorder %s24, 0
      %p118 = por %p116, %p117
      %p119 = scmp.ne.s32.totalorder %s105, %s106
      %p120 = scmp.eq.s32.totalorder %s25, 1
      %p121 = por %p119, %p120
      %p123 = scmp.ne.s32.totalorder %s106, %s122
      %p124 = scmp.eq.s32.totalorder %s25, 0
      %p125 = por %p123, %p124
      %p126 = scmp.le.s32.totalorder 1, %s19
      %p127 = scmp.lt.s32.totalorder %s19, 3
      %p128 = pnand %p126, %p127
      %p129 = pneg %p128
      // Predicated region
      $region9: #{tpu_custom_call.1} parent=5 // pred_check
        _
      $region10: #{tpu_custom_call.1} parent=5 // pred_check_branch
        %131 = sbr.rel (%p128) target = $region12
      $region11: #{tpu_custom_call.1} parent=5 // pred_region
        %s132 = ssub.s32 %s19, 1
        // Predicated region
        $region13: #{tpu_custom_call.1} parent=11 // pred_check
          %p133 = pneg %p40
        $region14: #{tpu_custom_call.1} parent=11 // pred_check_branch
          %135 = sbr.rel (%p133) target = $region16
        $region15: #{tpu_custom_call.1} parent=11 // pred_region
          _
        $region16: #{tpu_custom_call.1} parent=11 // pred_fallthru
          _
      $region12: #{tpu_custom_call.1} parent=5 // pred_fallthru
        _
      %p136 = scmp.lt.s32.totalorder %s19, 2
      // Predicated region
      $region17: #{tpu_custom_call.1} parent=5 // pred_check
        %p137 = pneg %p136
      $region18: #{tpu_custom_call.1} parent=5 // pred_check_branch
        %139 = sbr.rel (%p137) target = $region20
      $region19: #{tpu_custom_call.1} parent=5 // pred_region
        // Predicated region
        $region21: #{tpu_custom_call.1} parent=19 // pred_check
          %p140 = pneg %p60
        $region22: #{tpu_custom_call.1} parent=19 // pred_check_branch
          %142 = sbr.rel (%p140) target = $region24
        $region23: #{tpu_custom_call.1} parent=19 // pred_region
          %s143 = sand.u32 %s50, 1
          %s144 = scalar_lea.sflag [#allocation4], %s143
          %s145 = sand.u32 %s50, 1
          %s146 = smul.addr %s145, 8
          %s147 = scalar_lea.vmem [#allocation3], %s146
          %149 = vsyncadd %s144, 0
          %s150 = smul.addr %s19, 8
          %s151 = scalar_lea.hbm %s1, %s150
          %s153 = sshll.u32 %s151, 4
          %s154 = int_to_ptr.hbm [resolvable:$true] %s153
          %s155 = sshll.u32 %s147, 4
          %s156 = int_to_ptr.vmem [resolvable:$true] %s155
          %158 = dma.hbm_to_vmem [thread:$0]  %s154, 128, %s156, %s144
        $region24: #{tpu_custom_call.1} parent=19 // pred_fallthru
          _
        // Predicated region
        $region25: #{tpu_custom_call.1} parent=19 // pred_check
          %p159 = pneg %p86
        $region26: #{tpu_custom_call.1} parent=19 // pred_check_branch
          %161 = sbr.rel (%p159) target = $region28
        $region27: #{tpu_custom_call.1} parent=19 // pred_region
          %s162 = sand.u32 %s76, 1
          %s163 = scalar_lea.sflag [#allocation7], %s162
          %s164 = sand.u32 %s76, 1
          %s165 = smul.addr %s164, 8
          %s166 = scalar_lea.vmem [#allocation6], %s165
          %168 = vsyncadd %s163, 0
          %s169 = smul.addr %s19, 8
          %s170 = scalar_lea.hbm %s2, %s169
          %s172 = sshll.u32 %s170, 4
          %s173 = int_to_ptr.hbm [resolvable:$true] %s172
          %s174 = sshll.u32 %s166, 4
          %s175 = int_to_ptr.vmem [resolvable:$true] %s174
          %177 = dma.hbm_to_vmem [thread:$0]  %s173, 128, %s175, %s163
        $region28: #{tpu_custom_call.1} parent=19 // pred_fallthru
          _
      $region20: #{tpu_custom_call.1} parent=5 // pred_fallthru
        _
      %p178 = scmp.le.s32.totalorder 1, %s19
      %p179 = scmp.lt.s32.totalorder %s19, 3
      %p180 = pnand %p178, %p179
      %p181 = pneg %p180
      // Predicated region
      $region29: #{tpu_custom_call.1} parent=5 // pred_check
        _
      $region30: #{tpu_custom_call.1} parent=5 // pred_check_branch
        %183 = sbr.rel (%p180) target = $region32
      $region31: #{tpu_custom_call.1} parent=5 // pred_region
        %s184 = ssub.s32 %s19, 1
        %s185 = sand.u32 %s53, 1
        %s186 = scalar_lea.sflag [#allocation4], %s185
        %s187 = sand.u32 %s53, 1
        %s188 = smul.addr %s187, 8
        %s189 = scalar_lea.vmem [#allocation3], %s188
        // Predicated region
        $region33: #{tpu_custom_call.1} parent=31 // pred_check
          %p190 = pneg %p66
        $region34: #{tpu_custom_call.1} parent=31 // pred_check_branch
          %192 = sbr.rel (%p190) target = $region36
        $region35: #{tpu_custom_call.1} parent=31 // pred_region
          %194 = dma.done %s186, 128
        $region36: #{tpu_custom_call.1} parent=31 // pred_fallthru
          _
        %s195 = sand.u32 %s79, 1
        %s196 = scalar_lea.sflag [#allocation7], %s195
        %s197 = sand.u32 %s79, 1
        %s198 = smul.addr %s197, 8
        %s199 = scalar_lea.vmem [#allocation6], %s198
        // Predicated region
        $region37: #{tpu_custom_call.1} parent=31 // pred_check
          %p200 = pneg %p92
        $region38: #{tpu_custom_call.1} parent=31 // pred_check_branch
          %202 = sbr.rel (%p200) target = $region40
        $region39: #{tpu_custom_call.1} parent=31 // pred_region
          %204 = dma.done %s196, 128
        $region40: #{tpu_custom_call.1} parent=31 // pred_fallthru
          _
        %p205 = pneg %p40
        %p206 = pneg %p37
        %s207 = sand.u32 %s53, 1
        %s208 = scalar_lea.sflag [#allocation4], %s207
        %s209 = sand.u32 %s53, 1
        %s210 = smul.addr %s209, 8
        %s211 = scalar_lea.vmem [#allocation3], %s210
        %p212 = pneg %p66
        %p213 = pneg %p63
        %s214 = sand.u32 %s79, 1
        %s215 = scalar_lea.sflag [#allocation7], %s214
        %s216 = sand.u32 %s79, 1
        %s217 = smul.addr %s216, 8
        %s218 = scalar_lea.vmem [#allocation6], %s217
        %p219 = pneg %p92
        %p220 = pneg %p89
        %p221 = pneg %p118
        %p222 = pneg %p115
        %s223 = sand.u32 %s105, 1
        %s224 = scalar_lea.sflag [#allocation5], %s223
        %s225 = sand.u32 %s105, 1
        %s226 = smul.addr %s225, 8
        %s227 = scalar_lea.vmem [#allocation8], %s226
        %v228 = vld [vmem:[%s189] sm:$0xff]
        %v229 = vld [vmem:[%s199] sm:$0xff]
        %231 = vrot.lane.b32.xlu0 %v229, 32
        %v232 = vpop.permute.xlu0 %231
        %vm234 = vcmask 261120
        %v235 = vsel %vm234, %v229, %v232
        %v236 = vadd.f32 %v228, %v235
        %vm237 = vcmask 523264
        %238 = vst.msk [vmem:[%s227] sm:$0xff] %vm237, %v236
        %s239 = sand.u32 %s105, 1
        %s240 = scalar_lea.sflag [#allocation5], %s239
        %s241 = sand.u32 %s105, 1
        %s242 = smul.addr %s241, 8
        %s243 = scalar_lea.vmem [#allocation8], %s242
        // Predicated region
        $region41: #{tpu_custom_call.1} parent=31 // pred_check
          %p244 = pneg %p115
        $region42: #{tpu_custom_call.1} parent=31 // pred_check_branch
          %246 = sbr.rel (%p244) target = $region44
        $region43: #{tpu_custom_call.1} parent=31 // pred_region
          %248 = vsyncadd %s240, 0
          %s249 = smul.addr %s24, 8
          %s250 = scalar_lea.hbm %s3, %s249
          %s252 = sshll.u32 %s243, 4
          %s253 = int_to_ptr.vmem [resolvable:$true] %s252
          %s254 = sshll.u32 %s250, 4
          %s255 = int_to_ptr.hbm [resolvable:$true] %s254
          %257 = dma.vmem_to_hbm [thread:$0]  %s253, 128, %s255, %s240
        $region44: #{tpu_custom_call.1} parent=31 // pred_fallthru
          _
      $region32: #{tpu_custom_call.1} parent=5 // pred_fallthru
        _
      %p258 = scmp.le.s32.totalorder 2, %s19
      // Predicated region
      $region45: #{tpu_custom_call.1} parent=5 // pred_check
        %p259 = pneg %p258
      $region46: #{tpu_custom_call.1} parent=5 // pred_check_branch
        %261 = sbr.rel (%p259) target = $region48
      $region47: #{tpu_custom_call.1} parent=5 // pred_region
        %s262 = ssub.s32 %s19, 2
        // Predicated region
        $region49: #{tpu_custom_call.1} parent=47 // pred_check
          %p263 = pneg %p121
        $region50: #{tpu_custom_call.1} parent=47 // pred_check_branch
          %265 = sbr.rel (%p263) target = $region52
        $region51: #{tpu_custom_call.1} parent=47 // pred_region
          %s266 = sand.u32 %s106, 1
          %s267 = scalar_lea.sflag [#allocation5], %s266
          %s268 = sand.u32 %s106, 1
          %s269 = smul.addr %s268, 8
          %s270 = scalar_lea.vmem [#allocation8], %s269
          %272 = dma.done %s267, 128
        $region52: #{tpu_custom_call.1} parent=47 // pred_fallthru
          _
      $region48: #{tpu_custom_call.1} parent=5 // pred_fallthru
        _
    $region6: #{tpu_custom_call.1} parent=1 // loop_footer
      %s23 = sadd.s32 1, %s19
    $region7: #{tpu_custom_call.1} parent=1 // loop_footer_branch
      %18 = sbr.rel target = $region3
    $region8: #{tpu_custom_call.1} parent=1 // loop_exit
      _
    %273 = vsyncpa [#allocation4], 1
    %s274 = scalar_lea.sflag [#allocation4], 1
    %275 = vsyncpa %s274, 1
    %276 = vsyncpa [#allocation7], 1
    %s277 = scalar_lea.sflag [#allocation7], 1
    %278 = vsyncpa %s277, 1
    %279 = vsyncpa [#allocation5], 1
    %s280 = scalar_lea.sflag [#allocation5], 1
    %281 = vsyncpa %s280, 1

</llo_original>
